<compile_context>
chip_gen: v6e
topology: v6e:2x2x1
jax: 0.10.0
libtpu: 0.0.40
codegen_flags: <defaults>
</compile_context>

<pallas_src>
import jax
import jax.numpy as jnp
from jax import lax
from jax.experimental import pallas as pl
from jax.experimental.pallas import tpu as pltpu

_LANES = 128
_MAX_TILE_ROWS = 4096   # 4096 x 128 x f32 = 2 MiB/buffer; 2 streams double-buffered = 8 MiB
_NUM_SHARDS = 2         # leading 'parallel' axis -> 2 TCs on v7x; free on v5e/v6e


def _cdiv(a: int, b: int) -> int:
    return -(-a // b)


def _round_up(x: int, m: int) -> int:
    return _cdiv(x, m) * m


def _make_kernel(tile: int, inner: int, n_pos: int):
    r8 = tile // 8

    def kernel(s_ref, l_ref, out_ref, sq_p, cnt_p, sq_n, cnt_n):
        shard = pl.program_id(0)
        i = pl.program_id(1)

        @pl.when(i == 0)
        def _init():
            sq_p[...] = jnp.zeros_like(sq_p)
            cnt_p[...] = jnp.zeros_like(cnt_p)
            sq_n[...] = jnp.zeros_like(sq_n)
            cnt_n[...] = jnp.zeros_like(cnt_n)

        # Cast to f32 inside the kernel (inputs travel HBM->VMEM in native dtype).
        s = s_ref[...].astype(jnp.float32)
        l = l_ref[...].astype(jnp.float32)
        nz = l != 0.0          # zero-padded labels are excluded from num & denom
        d = s - l
        d2 = d * d

        # Flat element index -> pos/neg routing against the static boundary.
        row0 = (shard * inner + i) * tile
        rid = lax.broadcasted_iota(jnp.int32, (tile, _LANES), 0)
        lid = lax.broadcasted_iota(jnp.int32, (tile, _LANES), 1)
        flat_idx = (row0 + rid) * _LANES + lid
        is_pos = flat_idx < n_pos

        mask_p = jnp.logical_and(nz, is_pos)
        mask_n = jnp.logical_and(nz, jnp.logical_not(is_pos))

        def fold(mask, val):
            # Sublane-group partial sums: pure vreg (VPU) adds, no per-step XLU.
            return jnp.where(mask, val, 0.0).reshape(r8, 8, _LANES).sum(axis=0)

        sq_p[...] += fold(mask_p, d2)
        cnt_p[...] += fold(mask_p, 1.0)
        sq_n[...] += fold(mask_n, d2)
        cnt_n[...] += fold(mask_n, 1.0)

        @pl.when(i == pl.num_programs(1) - 1)
        def _finalize():
            out_ref[0, 0:8, :] = sq_p[...]
            out_ref[0, 8:16, :] = cnt_p[...]
            out_ref[0, 16:24, :] = sq_n[...]
            out_ref[0, 24:32, :] = cnt_n[...]

    return kernel


def mse_teacher_pointwise_passages(scores_pos, scores_neg, label_pos, label_neg):
    """JAX/Pallas equivalent of MSETeacherPointwisePassages.forward. Returns scalar f32."""
    p_pos = scores_pos.shape[1]
    p_neg = scores_neg.shape[1]
    # TODO(synk): the label column slice is a small wrapper-side copy; folding it
    # into the kernel is incompatible with the lane-dense flatten+concat, which
    # is the bigger bandwidth win.
    lp = label_pos[:, :p_pos]
    ln = label_neg[:, :p_neg]

    n_pos = scores_pos.size
    n_neg = scores_neg.size
    n_total = n_pos + n_neg

    # Balanced tiling: avoid padding a whole extra tile when rows is just over a
    # tile multiple, and split rows evenly across shards.
    rows = _cdiv(n_total, _LANES)
    shard_rows = max(1, _cdiv(rows, _NUM_SHARDS))
    inner = max(1, _cdiv(shard_rows, _MAX_TILE_ROWS))
    tile = _round_up(_cdiv(shard_rows, inner), 8)      # satisfies (8, 128) tiling
    m_pad = _NUM_SHARDS * inner * tile

    s_dtype = jnp.promote_types(scores_pos.dtype, scores_neg.dtype)
    l_dtype = jnp.promote_types(lp.dtype, ln.dtype)

    def slab(a, b, dtype):
        # Single fused concat+zero-pad copy; reshape to lane-dense [m_pad, 128].
        fa = a.reshape(-1).astype(dtype)
        fb = b.reshape(-1).astype(dtype)
        fill = jnp.zeros((m_pad * _LANES - n_total,), dtype)
        return jnp.concatenate([fa, fb, fill]).reshape(m_pad, _LANES)

    scores_slab = slab(scores_pos, scores_neg, s_dtype)
    labels_slab = slab(lp, ln, l_dtype)

    kernel = _make_kernel(tile, inner, n_pos)
    in_spec = pl.BlockSpec((tile, _LANES), lambda s, i: (s * inner + i, 0))
    out_spec = pl.BlockSpec((1, 32, _LANES), lambda s, i: (s, 0, 0))

    parts = pl.pallas_call(
        kernel,
        out_shape=jax.ShapeDtypeStruct((_NUM_SHARDS, 32, _LANES), jnp.float32),
        grid=(_NUM_SHARDS, inner),
        in_specs=[in_spec, in_spec],
        out_specs=out_spec,
        scratch_shapes=[
            pltpu.VMEM((8, _LANES), jnp.float32),   # sq_pos partials
            pltpu.VMEM((8, _LANES), jnp.float32),   # cnt_pos partials
            pltpu.VMEM((8, _LANES), jnp.float32),   # sq_neg partials
            pltpu.VMEM((8, _LANES), jnp.float32),   # cnt_neg partials
        ],
        compiler_params=pltpu.CompilerParams(
            dimension_semantics=("parallel", "arbitrary")),
    )(scores_slab, labels_slab)

    # Tiny (2, 32, 128) combine of per-shard partials.
    sq_p = jnp.sum(parts[:, 0:8, :])
    cnt_p = jnp.sum(parts[:, 8:16, :])
    sq_n = jnp.sum(parts[:, 16:24, :])
    cnt_n = jnp.sum(parts[:, 24:32, :])
    # 0/0 -> NaN intentionally matches torch's mean() over an empty selection.
    return (sq_p / cnt_p + sq_n / cnt_n) * jnp.float32(0.5)


if __name__ == "__main__":
    key = jax.random.PRNGKey(0)
    k1, k2, k3, k4, k5, k6 = jax.random.split(key, 6)

    # Labels carry extra passage columns that get sliced off; pos/neg passage
    # counts differ to exercise the concatenated-slab routing.
    B, P_POS, P_NEG, P_LABEL = 2, 8, 6, 10

    scores_pos = jax.random.normal(k1, (B, P_POS), dtype=jnp.float32)
    scores_neg = jax.random.normal(k2, (B, P_NEG), dtype=jnp.float32)

    label_pos = jax.random.normal(k3, (B, P_LABEL), dtype=jnp.float32)
    label_neg = jax.random.normal(k4, (B, P_LABEL), dtype=jnp.float32)
    # Zero out some label entries so the "label != 0" mask is non-trivial.
    mask_pos = jax.random.bernoulli(k5, 0.75, (B, P_LABEL))
    mask_neg = jax.random.bernoulli(k6, 0.75, (B, P_LABEL))
    label_pos = jnp.where(mask_pos, label_pos, 0.0)
    label_neg = jnp.where(mask_neg, label_neg, 0.0)

    loss = mse_teacher_pointwise_passages(scores_pos, scores_neg, label_pos, label_neg)
    loss = jax.block_until_ready(loss)

    # Pure-JAX reference check of the masked-mean semantics.
    def ref_masked_mse(s, l):
        l = l[:, : s.shape[1]]
        m = l != 0
        sq = (s - l) ** 2
        return jnp.sum(jnp.where(m, sq, 0.0)) / jnp.sum(m.astype(jnp.float32))

    ref = (ref_masked_mse(scores_pos, label_pos)
           + ref_masked_mse(scores_neg, label_neg)) / 2.0
    assert jnp.allclose(loss, ref, rtol=1e-5, atol=1e-6), (loss, ref)

    print("KERNEL_OK")
</pallas_src>

<mosaic_0001>
module attributes {stable_mosaic.version = 11 : i64} {
  func.func @kernel(%arg0: i32, %arg1: i32, %arg2: memref<8x128xf32, #tpu.memory_space<vmem>>, %arg3: memref<8x128xf32, #tpu.memory_space<vmem>>, %arg4: memref<1x32x128xf32, #tpu.memory_space<vmem>>, %arg5: memref<8x128xf32, #tpu.memory_space<vmem>>, %arg6: memref<8x128xf32, #tpu.memory_space<vmem>>, %arg7: memref<8x128xf32, #tpu.memory_space<vmem>>, %arg8: memref<8x128xf32, #tpu.memory_space<vmem>>) attributes {dimension_semantics = [#tpu.dimension_semantics<parallel>, #tpu.dimension_semantics<arbitrary>], iteration_bounds = array<i64: 2, 1>, scalar_prefetch = 0 : i64, scratch_operands = 4 : i64, tpu.core_type = #tpu.core_type<tc>, window_params = [{transform_indices = @transform_0, window_bounds = array<i64: 8, 128>}, {transform_indices = @transform_1, window_bounds = array<i64: 8, 128>}, {transform_indices = @transform_2, window_bounds = array<i64: 1, 32, 128>}]} {
    %c0_i32 = arith.constant 0 : i32
    %0 = arith.cmpi eq, %arg1, %c0_i32 : i32
    %1 = arith.extui %0 : i1 to i32
    %c0_i32_0 = arith.constant 0 : i32
    %2 = arith.cmpi ne, %1, %c0_i32_0 : i32
    scf.if %2 {
      %cst_33 = arith.constant 0.000000e+00 : f32
      %57 = vector.broadcast %cst_33 : f32 to vector<8x128xf32>
      %c0_34 = arith.constant 0 : index
      %c0_35 = arith.constant 0 : index
      %58 = vector.load %arg5[%c0_34, %c0_35] : memref<8x128xf32, #tpu.memory_space<vmem>>, vector<8x128xf32>
      tpu.vector_store %arg5[%c0_34, %c0_35], %57 {strides = array<i32>} : memref<8x128xf32, #tpu.memory_space<vmem>>, vector<8x128xf32>,
      %cst_36 = arith.constant 0.000000e+00 : f32
      %59 = vector.broadcast %cst_36 : f32 to vector<8x128xf32>
      %c0_37 = arith.constant 0 : index
      %c0_38 = arith.constant 0 : index
      %60 = vector.load %arg6[%c0_37, %c0_38] : memref<8x128xf32, #tpu.memory_space<vmem>>, vector<8x128xf32>
      tpu.vector_store %arg6[%c0_37, %c0_38], %59 {strides = array<i32>} : memref<8x128xf32, #tpu.memory_space<vmem>>, vector<8x128xf32>,
      %cst_39 = arith.constant 0.000000e+00 : f32
      %61 = vector.broadcast %cst_39 : f32 to vector<8x128xf32>
      %c0_40 = arith.constant 0 : index
      %c0_41 = arith.constant 0 : index
      %62 = vector.load %arg7[%c0_40, %c0_41] : memref<8x128xf32, #tpu.memory_space<vmem>>, vector<8x128xf32>
      tpu.vector_store %arg7[%c0_40, %c0_41], %61 {strides = array<i32>} : memref<8x128xf32, #tpu.memory_space<vmem>>, vector<8x128xf32>,
      %cst_42 = arith.constant 0.000000e+00 : f32
      %63 = vector.broadcast %cst_42 : f32 to vector<8x128xf32>
      %c0_43 = arith.constant 0 : index
      %c0_44 = arith.constant 0 : index
      %64 = vector.load %arg8[%c0_43, %c0_44] : memref<8x128xf32, #tpu.memory_space<vmem>>, vector<8x128xf32>
      tpu.vector_store %arg8[%c0_43, %c0_44], %63 {strides = array<i32>} : memref<8x128xf32, #tpu.memory_space<vmem>>, vector<8x128xf32>,
    } else {
    }
    %c0 = arith.constant 0 : index
    %c0_1 = arith.constant 0 : index
    %3 = vector.load %arg2[%c0, %c0_1] : memref<8x128xf32, #tpu.memory_space<vmem>>, vector<8x128xf32>
    %c0_2 = arith.constant 0 : index
    %c0_3 = arith.constant 0 : index
    %4 = vector.load %arg3[%c0_2, %c0_3] : memref<8x128xf32, #tpu.memory_space<vmem>>, vector<8x128xf32>
    %cst = arith.constant 0.000000e+00 : f32
    %5 = vector.broadcast %cst : f32 to vector<8x128xf32>
    %6 = arith.cmpf one, %4, %5 : vector<8x128xf32>
    %7 = arith.subf %3, %4 : vector<8x128xf32>
    %8 = arith.mulf %7, %7 : vector<8x128xf32>
    %c1_i32 = arith.constant 1 : i32
    %9 = arith.muli %arg0, %c1_i32 : i32
    %10 = arith.addi %9, %arg1 : i32
    %c8_i32 = arith.constant 8 : i32
    %11 = arith.muli %10, %c8_i32 : i32
    %12 = tpu.iota {dimensions = array<i32: 0>} : vector<8x128xi32>
    %13 = tpu.iota {dimensions = array<i32: 1>} : vector<8x128xi32>
    %14 = vector.broadcast %11 : i32 to vector<8x128xi32>
    %15 = arith.addi %14, %12 : vector<8x128xi32>
    %c128_i32 = arith.constant 128 : i32
    %16 = vector.broadcast %c128_i32 : i32 to vector<8x128xi32>
    %17 = arith.muli %15, %16 : vector<8x128xi32>
    %18 = arith.addi %17, %13 : vector<8x128xi32>
    %c16_i32 = arith.constant 16 : i32
    %19 = vector.broadcast %c16_i32 : i32 to vector<8x128xi32>
    %20 = arith.cmpi slt, %18, %19 : vector<8x128xi32>
    %21 = arith.andi %6, %20 : vector<8x128xi1>
    %cst_4 = arith.constant dense<true> : vector<8x128xi1>
    %22 = arith.xori %20, %cst_4 : vector<8x128xi1>
    %23 = arith.andi %6, %22 : vector<8x128xi1>
    %c0_5 = arith.constant 0 : index
    %c0_6 = arith.constant 0 : index
    %24 = vector.load %arg5[%c0_5, %c0_6] : memref<8x128xf32, #tpu.memory_space<vmem>>, vector<8x128xf32>
    %cst_7 = arith.constant 0.000000e+00 : f32
    %25 = vector.broadcast %cst_7 : f32 to vector<8x128xf32>
    %26 = arith.select %21, %8, %25 : vector<8x128xi1>, vector<8x128xf32>
    %27 = vector.shape_cast %26 : vector<8x128xf32> to vector<1x8x128xf32>
    %cst_8 = arith.constant dense<0.000000e+00> : vector<8x128xf32>
    %28 = vector.multi_reduction <add>, %27, %cst_8 [0] : vector<1x8x128xf32> to vector<8x128xf32>
    %29 = arith.addf %24, %28 : vector<8x128xf32>
    %c0_9 = arith.constant 0 : index
    %c0_10 = arith.constant 0 : index
    %30 = vector.load %arg5[%c0_9, %c0_10] : memref<8x128xf32, #tpu.memory_space<vmem>>, vector<8x128xf32>
    tpu.vector_store %arg5[%c0_9, %c0_10], %29 {strides = array<i32>} : memref<8x128xf32, #tpu.memory_space<vmem>>, vector<8x128xf32>,
    %c0_11 = arith.constant 0 : index
    %c0_12 = arith.constant 0 : index
    %31 = vector.load %arg6[%c0_11, %c0_12] : memref<8x128xf32, #tpu.memory_space<vmem>>, vector<8x128xf32>
    %cst_13 = arith.constant 1.000000e+00 : f32
    %cst_14 = arith.constant 0.000000e+00 : f32
    %32 = vector.broadcast %cst_13 : f32 to vector<8x128xf32>
    %33 = vector.broadcast %cst_14 : f32 to vector<8x128xf32>
    %34 = arith.select %21, %32, %33 : vector<8x128xi1>, vector<8x128xf32>
    %35 = vector.shape_cast %34 : vector<8x128xf32> to vector<1x8x128xf32>
    %cst_15 = arith.constant dense<0.000000e+00> : vector<8x128xf32>
    %36 = vector.multi_reduction <add>, %35, %cst_15 [0] : vector<1x8x128xf32> to vector<8x128xf32>
    %37 = arith.addf %31, %36 : vector<8x128xf32>
    %c0_16 = arith.constant 0 : index
    %c0_17 = arith.constant 0 : index
    %38 = vector.load %arg6[%c0_16, %c0_17] : memref<8x128xf32, #tpu.memory_space<vmem>>, vector<8x128xf32>
    tpu.vector_store %arg6[%c0_16, %c0_17], %37 {strides = array<i32>} : memref<8x128xf32, #tpu.memory_space<vmem>>, vector<8x128xf32>,
    %c0_18 = arith.constant 0 : index
    %c0_19 = arith.constant 0 : index
    %39 = vector.load %arg7[%c0_18, %c0_19] : memref<8x128xf32, #tpu.memory_space<vmem>>, vector<8x128xf32>
    %cst_20 = arith.constant 0.000000e+00 : f32
    %40 = vector.broadcast %cst_20 : f32 to vector<8x128xf32>
    %41 = arith.select %23, %8, %40 : vector<8x128xi1>, vector<8x128xf32>
    %42 = vector.shape_cast %41 : vector<8x128xf32> to vector<1x8x128xf32>
    %cst_21 = arith.constant dense<0.000000e+00> : vector<8x128xf32>
    %43 = vector.multi_reduction <add>, %42, %cst_21 [0] : vector<1x8x128xf32> to vector<8x128xf32>
    %44 = arith.addf %39, %43 : vector<8x128xf32>
    %c0_22 = arith.constant 0 : index
    %c0_23 = arith.constant 0 : index
    %45 = vector.load %arg7[%c0_22, %c0_23] : memref<8x128xf32, #tpu.memory_space<vmem>>, vector<8x128xf32>
    tpu.vector_store %arg7[%c0_22, %c0_23], %44 {strides = array<i32>} : memref<8x128xf32, #tpu.memory_space<vmem>>, vector<8x128xf32>,
    %c0_24 = arith.constant 0 : index
    %c0_25 = arith.constant 0 : index
    %46 = vector.load %arg8[%c0_24, %c0_25] : memref<8x128xf32, #tpu.memory_space<vmem>>, vector<8x128xf32>
    %cst_26 = arith.constant 1.000000e+00 : f32
    %cst_27 = arith.constant 0.000000e+00 : f32
    %47 = vector.broadcast %cst_26 : f32 to vector<8x128xf32>
    %48 = vector.broadcast %cst_27 : f32 to vector<8x128xf32>
    %49 = arith.select %23, %47, %48 : vector<8x128xi1>, vector<8x128xf32>
    %50 = vector.shape_cast %49 : vector<8x128xf32> to vector<1x8x128xf32>
    %cst_28 = arith.constant dense<0.000000e+00> : vector<8x128xf32>
    %51 = vector.multi_reduction <add>, %50, %cst_28 [0] : vector<1x8x128xf32> to vector<8x128xf32>
    %52 = arith.addf %46, %51 : vector<8x128xf32>
    %c0_29 = arith.constant 0 : index
    %c0_30 = arith.constant 0 : index
    %53 = vector.load %arg8[%c0_29, %c0_30] : memref<8x128xf32, #tpu.memory_space<vmem>>, vector<8x128xf32>
    tpu.vector_store %arg8[%c0_29, %c0_30], %52 {strides = array<i32>} : memref<8x128xf32, #tpu.memory_space<vmem>>, vector<8x128xf32>,
    %c0_i32_31 = arith.constant 0 : i32
    %54 = arith.cmpi eq, %arg1, %c0_i32_31 : i32
    %55 = arith.extui %54 : i1 to i32
    %c0_i32_32 = arith.constant 0 : i32
    %56 = arith.cmpi ne, %55, %c0_i32_32 : i32
    scf.if %56 {
      %c0_33 = arith.constant 0 : index
      %c0_34 = arith.constant 0 : index
      %57 = vector.load %arg5[%c0_33, %c0_34] : memref<8x128xf32, #tpu.memory_space<vmem>>, vector<8x128xf32>
      %c0_35 = arith.constant 0 : index
      %c0_36 = arith.constant 0 : index
      %c0_37 = arith.constant 0 : index
      %58 = vector.load %arg4[%c0_35, %c0_36, %c0_37] : memref<1x32x128xf32, #tpu.memory_space<vmem>>, vector<1x8x128xf32>
      %59 = vector.shape_cast %58 : vector<1x8x128xf32> to vector<8x128xf32>
      %60 = vector.shape_cast %57 : vector<8x128xf32> to vector<1x8x128xf32>
      tpu.vector_store %arg4[%c0_35, %c0_36, %c0_37], %60 {strides = array<i32>} : memref<1x32x128xf32, #tpu.memory_space<vmem>>, vector<1x8x128xf32>,
      %c0_38 = arith.constant 0 : index
      %c0_39 = arith.constant 0 : index
      %61 = vector.load %arg6[%c0_38, %c0_39] : memref<8x128xf32, #tpu.memory_space<vmem>>, vector<8x128xf32>
      %c0_40 = arith.constant 0 : index
      %c8 = arith.constant 8 : index
      %c0_41 = arith.constant 0 : index
      %62 = vector.load %arg4[%c0_40, %c8, %c0_41] : memref<1x32x128xf32, #tpu.memory_space<vmem>>, vector<1x8x128xf32>
      %63 = vector.shape_cast %62 : vector<1x8x128xf32> to vector<8x128xf32>
      %64 = vector.shape_cast %61 : vector<8x128xf32> to vector<1x8x128xf32>
      tpu.vector_store %arg4[%c0_40, %c8, %c0_41], %64 {strides = array<i32>} : memref<1x32x128xf32, #tpu.memory_space<vmem>>, vector<1x8x128xf32>,
      %c0_42 = arith.constant 0 : index
      %c0_43 = arith.constant 0 : index
      %65 = vector.load %arg7[%c0_42, %c0_43] : memref<8x128xf32, #tpu.memory_space<vmem>>, vector<8x128xf32>
      %c0_44 = arith.constant 0 : index
      %c16 = arith.constant 16 : index
      %c0_45 = arith.constant 0 : index
      %66 = vector.load %arg4[%c0_44, %c16, %c0_45] : memref<1x32x128xf32, #tpu.memory_space<vmem>>, vector<1x8x128xf32>
      %67 = vector.shape_cast %66 : vector<1x8x128xf32> to vector<8x128xf32>
      %68 = vector.shape_cast %65 : vector<8x128xf32> to vector<1x8x128xf32>
      tpu.vector_store %arg4[%c0_44, %c16, %c0_45], %68 {strides = array<i32>} : memref<1x32x128xf32, #tpu.memory_space<vmem>>, vector<1x8x128xf32>,
      %c0_46 = arith.constant 0 : index
      %c0_47 = arith.constant 0 : index
      %69 = vector.load %arg8[%c0_46, %c0_47] : memref<8x128xf32, #tpu.memory_space<vmem>>, vector<8x128xf32>
      %c0_48 = arith.constant 0 : index
      %c24 = arith.constant 24 : index
      %c0_49 = arith.constant 0 : index
      %70 = vector.load %arg4[%c0_48, %c24, %c0_49] : memref<1x32x128xf32, #tpu.memory_space<vmem>>, vector<1x8x128xf32>
      %71 = vector.shape_cast %70 : vector<1x8x128xf32> to vector<8x128xf32>
      %72 = vector.shape_cast %69 : vector<8x128xf32> to vector<1x8x128xf32>
      tpu.vector_store %arg4[%c0_48, %c24, %c0_49], %72 {strides = array<i32>} : memref<1x32x128xf32, #tpu.memory_space<vmem>>, vector<1x8x128xf32>,
    } else {
    }
    return
  }
  func.func @transform_0(%arg0: i32, %arg1: i32) -> (i32, i32) {
    %c1_i32 = arith.constant 1 : i32
    %0 = arith.muli %arg0, %c1_i32 : i32
    %1 = arith.addi %0, %arg1 : i32
    %c0_i32 = arith.constant 0 : i32
    %c0_i32_0 = arith.constant 0 : i32
    return %1, %c0_i32 : i32, i32
  }
  func.func @transform_1(%arg0: i32, %arg1: i32) -> (i32, i32) {
    %c1_i32 = arith.constant 1 : i32
    %0 = arith.muli %arg0, %c1_i32 : i32
    %1 = arith.addi %0, %arg1 : i32
    %c0_i32 = arith.constant 0 : i32
    %c0_i32_0 = arith.constant 0 : i32
    return %1, %c0_i32 : i32, i32
  }
  func.func @transform_2(%arg0: i32, %arg1: i32) -> (i32, i32, i32) {
    %c0_i32 = arith.constant 0 : i32
    %c0_i32_0 = arith.constant 0 : i32
    %c0_i32_1 = arith.constant 0 : i32
    return %arg0, %c0_i32, %c0_i32_0 : i32, i32, i32
  }
}

</mosaic_0001>

<llo_original>
// kernel: tpu_custom_call.1
$region0: #{tpu_custom_call.1}
  #allocation0 [shape = 'u32[]', space=smem, size = 0x4, offset = 0x4, fixed_abs, tag = 'smem constant byte address 0x4 - core index']
  #allocation1 [shape = 'u32[144,128]{1,0:T(1,128)}', space=vmem, size = 0x12000, scoped, tag = 'internal scratch']
  #allocation2 [shape = 'f32[8,128]{1,0:T(8,128)}', space=vmem, size = 0x1000, scoped, tag = 'scratch operand']
  #allocation3 [shape = 'f32[8,128]{1,0:T(8,128)}', space=vmem, size = 0x1000, scoped, tag = 'scratch operand']
  #allocation4 [shape = 'f32[8,128]{1,0:T(8,128)}', space=vmem, size = 0x1000, scoped, tag = 'scratch operand']
  #allocation5 [shape = 'f32[8,128]{1,0:T(8,128)}', space=vmem, size = 0x1000, scoped, tag = 'scratch operand']
  %s0 = inlined_call_operand.hbm [shape: f32[16,128], index: 0, kind: input, shape index: {}]
  %s1 = inlined_call_operand.hbm [shape: f32[16,128], index: 1, kind: input, shape index: {}]
  %s2 = inlined_call_operand.hbm [shape: f32[2,32,128], index: 2, kind: output, shape index: {}]
  %s3 = sld [smem:[#allocation0]]
  $region57: #{tpu_custom_call.1} parent=0
    _
  %s5 = ssub.s32 1, %s3
  %s6 = scalar_select 0, %s5, %s3
  $region1: #{tpu_custom_call.1} parent=0
    #allocation6 [shape = 'u8[8192]{0}', space=vmem, size = 0x2000, scoped, tag = 'input window, operand 0']
    #allocation7 [shape = 's32[2]{0}', space=sflag, size = 0x8, scoped, tag = 'scoped memory for tpu_custom_call.1']
    #allocation8 [shape = 's32[2]{0}', space=sflag, size = 0x8, scoped, tag = 'scoped memory for tpu_custom_call.1']
    #allocation9 [shape = 'u8[8192]{0}', space=vmem, size = 0x2000, scoped, tag = 'input window, operand 1']
    #allocation10 [shape = 's32[2]{0}', space=sflag, size = 0x8, scoped, tag = 'scoped memory for tpu_custom_call.1']
    #allocation11 [shape = 'u8[32768]{0}', space=vmem, size = 0x8000, scoped, tag = 'output window, operand 0']
    %7 = vsyncpa [#allocation7], 0
    %s8 = scalar_lea.sflag [#allocation7], 1
    %9 = vsyncpa %s8, 0
    %10 = vsyncpa [#allocation10], 0
    %s11 = scalar_lea.sflag [#allocation10], 1
    %12 = vsyncpa %s11, 0
    %13 = vsyncpa [#allocation8], 0
    %s14 = scalar_lea.sflag [#allocation8], 1
    %15 = vsyncpa %s14, 0
    loop: start=0, step=1, limit=4
    $region2: #{tpu_custom_call.1} parent=1 // loop_pre_header
      _
    $region3: #{tpu_custom_call.1} parent=1 // loop_header
      %s17 = sphi 0, %s21
      %p18 = scmp.ge.s32.totalorder %s17, 4
      %s24 = sphi 0, %s36
      %s25 = sphi 0, %s32
      %s26 = sphi 0, %s24
      %s27 = sphi 0, %s25
      %s28 = sphi 0, %s26
      %s29 = sphi 0, %s27
      %s41 = sphi 0, %s43
      %s44 = sphi 0, %s41
      %s45 = sphi 0, %s44
      %s61 = sphi 0, %s45
      %s69 = sphi 0, %s71
      %s72 = sphi 0, %s69
      %s73 = sphi 0, %s72
      %s89 = sphi 0, %s73
      %s95 = sphi 0, %s97
      %s98 = sphi 0, %s95
      %s99 = sphi 0, %s98
      %s115 = sphi 0, %s99
    $region4: #{tpu_custom_call.1} parent=1 // loop_header_branch
      %20 = sbr.rel (%p18) target = $region8
    $region5: #{tpu_custom_call.1} parent=1 // loop_body
      %s22 = ssub.s32 %s17, 1
      %s23 = ssub.s32 %s17, 2
      %s30 = sadd.s32 1, %s25
      %p31 = scmp.ge.s32.totalorder %s30, 1
      %s32 = scalar_select %p31, 0, %s30
      %s33 = sadd.s32 1, %s24
      %s34 = scalar_select %p31, %s33, %s24
      %p35 = scmp.ge.s32.totalorder %s34, 2
      %s36 = scalar_select %p35, 0, %s34
      %s37 = sadd.s32 %s24, %s25
      %s38 = sadd.s32 %s36, %s32
      %s39 = ssub.s32 %s37, %s38
      %p40 = scmp.eq.s32.totalorder %s39, 0
      %s42 = sadd.s32 %s41, 1
      %s43 = scalar_select %p40, %s41, %s42
      %p46 = pneg %p40
      %p47 = scmp.eq.s32.totalorder %s17, 1
      %p48 = por %p46, %p47
      %p49 = scmp.ne.s32.totalorder %s41, %s44
      %p50 = scmp.eq.s32.totalorder %s17, 0
      %p51 = por %p49, %p50
      %p52 = scmp.ne.s32.totalorder %s41, %s44
      %p53 = scmp.eq.s32.totalorder %s22, 1
      %p54 = por %p52, %p53
      %p55 = scmp.ne.s32.totalorder %s44, %s45
      %p56 = scmp.eq.s32.totalorder %s22, 0
      %p57 = por %p55, %p56
      %p58 = scmp.ne.s32.totalorder %s44, %s45
      %p59 = scmp.eq.s32.totalorder %s23, 1
      %p60 = por %p58, %p59
      %p62 = scmp.ne.s32.totalorder %s45, %s61
      %p63 = scmp.eq.s32.totalorder %s23, 0
      %p64 = por %p62, %p63
      %s65 = sadd.s32 %s24, %s25
      %s66 = sadd.s32 %s36, %s32
      %s67 = ssub.s32 %s65, %s66
      %p68 = scmp.eq.s32.totalorder %s67, 0
      %s70 = sadd.s32 %s69, 1
      %s71 = scalar_select %p68, %s69, %s70
      %p74 = pneg %p68
      %p75 = scmp.eq.s32.totalorder %s17, 1
      %p76 = por %p74, %p75
      %p77 = scmp.ne.s32.totalorder %s69, %s72
      %p78 = scmp.eq.s32.totalorder %s17, 0
      %p79 = por %p77, %p78
      %p80 = scmp.ne.s32.totalorder %s69, %s72
      %p81 = scmp.eq.s32.totalorder %s22, 1
      %p82 = por %p80, %p81
      %p83 = scmp.ne.s32.totalorder %s72, %s73
      %p84 = scmp.eq.s32.totalorder %s22, 0
      %p85 = por %p83, %p84
      %p86 = scmp.ne.s32.totalorder %s72, %s73
      %p87 = scmp.eq.s32.totalorder %s23, 1
      %p88 = por %p86, %p87
      %p90 = scmp.ne.s32.totalorder %s73, %s89
      %p91 = scmp.eq.s32.totalorder %s23, 0
      %p92 = por %p90, %p91
      %s93 = ssub.s32 %s24, %s36
      %p94 = scmp.eq.s32.totalorder %s93, 0
      %s96 = sadd.s32 %s95, 1
      %s97 = scalar_select %p94, %s95, %s96
      %p100 = pneg %p94
      %p101 = scmp.eq.s32.totalorder %s17, 1
      %p102 = por %p100, %p101
      %p103 = scmp.ne.s32.totalorder %s95, %s98
      %p104 = scmp.eq.s32.totalorder %s17, 0
      %p105 = por %p103, %p104
      %p106 = scmp.ne.s32.totalorder %s95, %s98
      %p107 = scmp.eq.s32.totalorder %s22, 1
      %p108 = por %p106, %p107
      %p109 = scmp.ne.s32.totalorder %s98, %s99
      %p110 = scmp.eq.s32.totalorder %s22, 0
      %p111 = por %p109, %p110
      %p112 = scmp.ne.s32.totalorder %s98, %s99
      %p113 = scmp.eq.s32.totalorder %s23, 1
      %p114 = por %p112, %p113
      %p116 = scmp.ne.s32.totalorder %s99, %s115
      %p117 = scmp.eq.s32.totalorder %s23, 0
      %p118 = por %p116, %p117
      %p119 = scmp.le.s32.totalorder 1, %s17
      %p120 = scmp.lt.s32.totalorder %s17, 3
      %p121 = pnand %p119, %p120
      %p122 = pneg %p121
      // Predicated region
      $region9: #{tpu_custom_call.1} parent=5 // pred_check
        _
      $region10: #{tpu_custom_call.1} parent=5 // pred_check_branch
        %124 = sbr.rel (%p121) target = $region12
      $region11: #{tpu_custom_call.1} parent=5 // pred_region
        %s125 = ssub.s32 %s17, 1
      $region12: #{tpu_custom_call.1} parent=5 // pred_fallthru
        _
      %p126 = scmp.lt.s32.totalorder %s17, 2
      // Predicated region
      $region13: #{tpu_custom_call.1} parent=5 // pred_check
        %p127 = pneg %p126
      $region14: #{tpu_custom_call.1} parent=5 // pred_check_branch
        %129 = sbr.rel (%p127) target = $region16
      $region15: #{tpu_custom_call.1} parent=5 // pred_region
        // Predicated region
        $region17: #{tpu_custom_call.1} parent=15 // pred_check
          %p130 = pneg %p51
        $region18: #{tpu_custom_call.1} parent=15 // pred_check_branch
          %132 = sbr.rel (%p130) target = $region20
        $region19: #{tpu_custom_call.1} parent=15 // pred_region
          %s133 = sand.u32 %s41, 1
          %s134 = scalar_lea.sflag [#allocation7], %s133
          %s135 = sand.u32 %s41, 1
          %s136 = smul.addr %s135, 8
          %s137 = scalar_lea.vmem [#allocation6], %s136
          %s138 = sadd.s32 %s24, %s25
          %s140 = ssub.s32 128, 128
          %141 = vsyncadd %s134, %s140
          %s142 = smul.addr %s138, 128
          %s143 = scalar_lea.hbm %s0, %s142
          %s145 = sshll.u32 %s137, 4
          %s146 = int_to_ptr.vmem [resolvable:$true] %s145
          %148 = dma.hbm_to_vmem [thread:$0]  %s143, 128, %s146, %s134
        $region20: #{tpu_custom_call.1} parent=15 // pred_fallthru
          _
        // Predicated region
        $region21: #{tpu_custom_call.1} parent=15 // pred_check
          %p149 = pneg %p79
        $region22: #{tpu_custom_call.1} parent=15 // pred_check_branch
          %151 = sbr.rel (%p149) target = $region24
        $region23: #{tpu_custom_call.1} parent=15 // pred_region
          %s152 = sand.u32 %s69, 1
          %s153 = scalar_lea.sflag [#allocation10], %s152
          %s154 = sand.u32 %s69, 1
          %s155 = smul.addr %s154, 8
          %s156 = scalar_lea.vmem [#allocation9], %s155
          %s157 = sadd.s32 %s24, %s25
          %s159 = ssub.s32 128, 128
          %160 = vsyncadd %s153, %s159
          %s161 = smul.addr %s157, 128
          %s162 = scalar_lea.hbm %s1, %s161
          %s164 = sshll.u32 %s156, 4
          %s165 = int_to_ptr.vmem [resolvable:$true] %s164
          %167 = dma.hbm_to_vmem [thread:$0]  %s162, 128, %s165, %s153
        $region24: #{tpu_custom_call.1} parent=15 // pred_fallthru
          _
      $region16: #{tpu_custom_call.1} parent=5 // pred_fallthru
        _
      %p168 = scmp.le.s32.totalorder 1, %s17
      %p169 = scmp.lt.s32.totalorder %s17, 3
      %p170 = pnand %p168, %p169
      %p171 = pneg %p170
      // Predicated region
      $region25: #{tpu_custom_call.1} parent=5 // pred_check
        _
      $region26: #{tpu_custom_call.1} parent=5 // pred_check_branch
        %173 = sbr.rel (%p170) target = $region28
      $region27: #{tpu_custom_call.1} parent=5 // pred_region
        %s174 = ssub.s32 %s17, 1
        %s175 = sand.u32 %s44, 1
        %s176 = scalar_lea.sflag [#allocation7], %s175
        %s177 = sand.u32 %s44, 1
        %s178 = smul.addr %s177, 8
        %s179 = scalar_lea.vmem [#allocation6], %s178
        // Predicated region
        $region29: #{tpu_custom_call.1} parent=27 // pred_check
          %p180 = pneg %p57
        $region30: #{tpu_custom_call.1} parent=27 // pred_check_branch
          %182 = sbr.rel (%p180) target = $region32
        $region31: #{tpu_custom_call.1} parent=27 // pred_region
          %183 = dma.done %s176, 128
        $region32: #{tpu_custom_call.1} parent=27 // pred_fallthru
          _
        %s184 = sand.u32 %s72, 1
        %s185 = scalar_lea.sflag [#allocation10], %s184
        %s186 = sand.u32 %s72, 1
        %s187 = smul.addr %s186, 8
        %s188 = scalar_lea.vmem [#allocation9], %s187
        // Predicated region
        $region33: #{tpu_custom_call.1} parent=27 // pred_check
          %p189 = pneg %p85
        $region34: #{tpu_custom_call.1} parent=27 // pred_check_branch
          %191 = sbr.rel (%p189) target = $region36
        $region35: #{tpu_custom_call.1} parent=27 // pred_region
          %192 = dma.done %s185, 128
        $region36: #{tpu_custom_call.1} parent=27 // pred_fallthru
          _
        %s193 = sand.u32 %s44, 1
        %s194 = scalar_lea.sflag [#allocation7], %s193
        %s195 = sand.u32 %s44, 1
        %s196 = smul.addr %s195, 8
        %s197 = scalar_lea.vmem [#allocation6], %s196
        %p198 = pneg %p57
        %p199 = pneg %p54
        %s200 = sand.u32 %s72, 1
        %s201 = scalar_lea.sflag [#allocation10], %s200
        %s202 = sand.u32 %s72, 1
        %s203 = smul.addr %s202, 8
        %s204 = scalar_lea.vmem [#allocation9], %s203
        %p205 = pneg %p85
        %p206 = pneg %p82
        %p207 = pneg %p111
        %p208 = pneg %p108
        %s209 = sand.u32 %s98, 1
        %s210 = scalar_lea.sflag [#allocation8], %s209
        %s211 = sand.u32 %s98, 1
        %s212 = smul.addr %s211, 32
        %s213 = scalar_lea.vmem [#allocation11], %s212
        %s214 = sadd.s32 %s26, %s27
        %s215 = sadd.s32 %s26, %s27
        %p216 = scmp.eq.s32.totalorder %s27, 0
        // Predicated region
        $region37: #{tpu_custom_call.1} parent=27 // pred_check
          %p217 = pneg %p216
        $region38: #{tpu_custom_call.1} parent=27 // pred_check_branch
          %219 = sbr.rel (%p217) target = $region40
        $region39: #{tpu_custom_call.1} parent=27 // pred_region
          %220 = vst [vmem:[#allocation2] sm:$0xff] 0.0
          %221 = vst [vmem:[#allocation3] sm:$0xff] 0.0
          %222 = vst [vmem:[#allocation4] sm:$0xff] 0.0
          %223 = vst [vmem:[#allocation5] sm:$0xff] 0.0
        $region40: #{tpu_custom_call.1} parent=27 // pred_fallthru
          _
        %v224 = vld [vmem:[%s179] sm:$0xff]
        %v225 = vld [vmem:[%s188] sm:$0xff]
        %vm226 = vcmp.ne.f32.partialorder %v225, 0.0
        %v227 = vsub.f32 %v224, %v225
        %v228 = vmul.f32 %v227, %v227
        %s229 = sadd.s32 %s26, %s27
        %s230 = smul.u32 %s229, 8
        %v231 = vlaneseq
        %v232 = vshrl.u32 %v231, 7
        %v233 = vlaneseq
        %v234 = vand.u32 %v233, 127
        %v235 = vstv %s230
        %v236 = vadd.s32 %v235, %v232
        %v237 = vmul.u32 %v236, 128
        %v238 = vadd.s32 %v237, %v234
        %vm239 = vcmp.lt.s32.totalorder %v238, 16
        %vm240 = vmand %vm226, %vm239
        %vm241 = vmxor %vm239, 1
        %vm242 = vmand %vm226, %vm241
        %v243 = vld [vmem:[#allocation2] sm:$0xff]
        %v244 = vsel %vm240, %v228, 0.0
        %v245 = vadd.f32 %v244, 0.0
        %v246 = vadd.f32 %v243, %v245
        %247 = vst [vmem:[#allocation2] sm:$0xff] %v246
        %v248 = vld [vmem:[#allocation3] sm:$0xff]
        %v249 = vsel %vm240, 1.0, 0.0
        %v250 = vadd.f32 %v249, 0.0
        %v251 = vadd.f32 %v248, %v250
        %252 = vst [vmem:[#allocation3] sm:$0xff] %v251
        %v253 = vld [vmem:[#allocation4] sm:$0xff]
        %v254 = vsel %vm242, %v228, 0.0
        %v255 = vadd.f32 %v254, 0.0
        %v256 = vadd.f32 %v253, %v255
        %257 = vst [vmem:[#allocation4] sm:$0xff] %v256
        %v258 = vld [vmem:[#allocation5] sm:$0xff]
        %v259 = vsel %vm242, 1.0, 0.0
        %v260 = vadd.f32 %v259, 0.0
        %v261 = vadd.f32 %v258, %v260
        %262 = vst [vmem:[#allocation5] sm:$0xff] %v261
        // Predicated region
        $region41: #{tpu_custom_call.1} parent=27 // pred_check
          %p263 = pneg %p216
        $region42: #{tpu_custom_call.1} parent=27 // pred_check_branch
          %265 = sbr.rel (%p263) target = $region44
        $region43: #{tpu_custom_call.1} parent=27 // pred_region
          %v266 = vld [vmem:[#allocation2] sm:$0xff]
          %267 = vst [vmem:[%s213] sm:$0xff] %v266
          %v268 = vld [vmem:[#allocation3] sm:$0xff]
          %269 = vst [vmem:[%s213 + $0x8] sm:$0xff] %v268
          %v270 = vld [vmem:[#allocation4] sm:$0xff]
          %271 = vst [vmem:[%s213 + $0x10] sm:$0xff] %v270
          %v272 = vld [vmem:[#allocation5] sm:$0xff]
          %273 = vst [vmem:[%s213 + $0x18] sm:$0xff] %v272
        $region44: #{tpu_custom_call.1} parent=27 // pred_fallthru
          _
        %s274 = sand.u32 %s98, 1
        %s275 = scalar_lea.sflag [#allocation8], %s274
        %s276 = sand.u32 %s98, 1
        %s277 = smul.addr %s276, 32
        %s278 = scalar_lea.vmem [#allocation11], %s277
        // Predicated region
        $region45: #{tpu_custom_call.1} parent=27 // pred_check
          %p279 = pneg %p108
        $region46: #{tpu_custom_call.1} parent=27 // pred_check_branch
          %281 = sbr.rel (%p279) target = $region48
        $region47: #{tpu_custom_call.1} parent=27 // pred_region
          %s283 = ssub.s32 512, 512
          %284 = vsyncadd %s275, %s283
          %s285 = smul.addr %s26, 4
          %s286 = smul.addr %s285, 128
          %s287 = scalar_lea.hbm %s2, %s286
          %s288 = sshll.u32 %s278, 4
          %s289 = int_to_ptr.vmem [resolvable:$true] %s288
          %294 = dma.vmem_to_hbm [thread:$0]  %s289, 512, %s287, %s275, 128, 128, 8
        $region48: #{tpu_custom_call.1} parent=27 // pred_fallthru
          _
      $region28: #{tpu_custom_call.1} parent=5 // pred_fallthru
        _
      %p295 = scmp.le.s32.totalorder 2, %s17
      // Predicated region
      $region49: #{tpu_custom_call.1} parent=5 // pred_check
        %p296 = pneg %p295
      $region50: #{tpu_custom_call.1} parent=5 // pred_check_branch
        %298 = sbr.rel (%p296) target = $region52
      $region51: #{tpu_custom_call.1} parent=5 // pred_region
        %s299 = ssub.s32 %s17, 2
        // Predicated region
        $region53: #{tpu_custom_call.1} parent=51 // pred_check
          %p300 = pneg %p114
        $region54: #{tpu_custom_call.1} parent=51 // pred_check_branch
          %302 = sbr.rel (%p300) target = $region56
        $region55: #{tpu_custom_call.1} parent=51 // pred_region
          %s303 = sand.u32 %s99, 1
          %s304 = scalar_lea.sflag [#allocation8], %s303
          %s305 = sand.u32 %s99, 1
          %s306 = smul.addr %s305, 32
          %s307 = scalar_lea.vmem [#allocation11], %s306
          %308 = dma.done %s304, 512
        $region56: #{tpu_custom_call.1} parent=51 // pred_fallthru
          _
      $region52: #{tpu_custom_call.1} parent=5 // pred_fallthru
        _
    $region6: #{tpu_custom_call.1} parent=1 // loop_footer
      %s21 = sadd.s32 1, %s17
    $region7: #{tpu_custom_call.1} parent=1 // loop_footer_branch
      %16 = sbr.rel target = $region3
    $region8: #{tpu_custom_call.1} parent=1 // loop_exit
      _
    %309 = vsyncpa [#allocation7], 1
    %s310 = scalar_lea.sflag [#allocation7], 1
    %311 = vsyncpa %s310, 1
    %312 = vsyncpa [#allocation10], 1
    %s313 = scalar_lea.sflag [#allocation10], 1
    %314 = vsyncpa %s313, 1
    %315 = vsyncpa [#allocation8], 1
    %s316 = scalar_lea.sflag [#allocation8], 1
    %317 = vsyncpa %s316, 1

</llo_original>
